<compile_context>
chip_gen: v5e
topology: v5e:2x2
jax: 0.10.0
libtpu: 0.0.40
codegen_flags: <defaults>
</compile_context>

<pallas_src>
import numpy as np
import jax
import jax.numpy as jnp
from jax import lax
from jax.experimental import pallas as pl
from jax.experimental.pallas import tpu as pltpu


def _cdiv(a, b):
    return -(-a // b)


def _round_up(a, b):
    return _cdiv(a, b) * b


# ------------------------------ Pallas kernel -------------------------------

def _make_stem_kernel(BH, Wp, Cout):
    """Fused conv3x3/s2 (+BN scale) + bias + ReLU + maxpool3x3/s2 for one tile.

    Refs:
      s_ref : (1, 2*BH+2, Wep, Kp) bf16 im2col patches.  Row r is the padded
              pool-space row 2*t*BH + r (edge replicated).  Columns are laid
              out parity-major: [even padded cols 0..2Wp] ++ [odd 1..2Wp-1],
              so the three pool-column groups are CONTIGUOUS slices.
      w_ref : (Kp, 128)  bf16 conv weight with BN scale folded in.
      b_ref : (1, 128)   f32 folded BN bias.
      o_ref : (1, BH, Wp, Cout) f32 pooled output rows.
      yrow  : (Wep, 128) f32 scratch holding one conv row of outputs.
    """

    def kernel(s_ref, w_ref, b_ref, o_ref, yrow_ref):
        w = w_ref[...]                       # (Kp, 128) bf16, held in vregs
        b = b_ref[...]                       # (1, 128)  f32

        def conv_row_colmax(r):
            # Conv for every (padded) column of patch row r, then the 3-wide /
            # stride-2 column max.  Parity-major layout -> contiguous reads.
            yrow_ref[...] = jnp.dot(s_ref[0, r, :, :], w,
                                    preferred_element_type=jnp.float32)
            e0 = yrow_ref[pl.ds(0, Wp), :]        # padded cols 2*pw      (dc=0)
            e1 = yrow_ref[pl.ds(1, Wp), :]        # padded cols 2*pw + 2  (dc=2)
            od = yrow_ref[pl.ds(Wp + 1, Wp), :]   # padded cols 2*pw + 1  (dc=1)
            return jnp.maximum(jnp.maximum(e0, e1), od)      # (Wp, 128) f32

        # Row pooling with a carried even row: every conv row is matmul'ed
        # exactly once (2*BH + 1 dots per tile; the last patch row is unused).
        prev_even = conv_row_colmax(0)
        for ph in range(BH):
            odd_row = conv_row_colmax(2 * ph + 1)
            next_even = conv_row_colmax(2 * ph + 2)
            pooled = jnp.maximum(jnp.maximum(prev_even, odd_row), next_even)
            # bias + ReLU after the max: max_t relu(x_t + b) == relu(max_t x_t + b)
            pooled = jnp.maximum(pooled + b, 0.0)
            o_ref[0, ph, :, :] = pooled[:, :Cout].astype(o_ref.dtype)
            prev_even = next_even

    return kernel


# ------------------------------ host wrapper ---------------------------------

def basic_stem_forward(x_nchw, w_oihw, gamma, beta, run_mean, run_var, eps=1e-5):
    """BasicStem forward (eval-mode BN). x: (N, Cin, H, W) f32 -> (N, Cout, H//4, W//4)."""
    # TODO(synk): training-mode BN (batch statistics + running-stat update) is
    # not implemented; this is the inference path.
    N, Cin, H, W = x_nchw.shape
    Cout = w_oihw.shape[0]

    # conv / pool output sizes for k=3, stride=2, pad=1 (floor mode).  The
    # edge-replication == -inf pool padding trick below is only valid for
    # exactly these constants.
    Ho = (H - 1) // 2 + 1
    Wo = (W - 1) // 2 + 1
    Hp = (Ho - 1) // 2 + 1
    Wp = (Wo - 1) // 2 + 1

    K = 9 * Cin
    Kp = _round_up(K, 32)                  # contraction dim (zero padded)
    Cp = 128                               # lane-dense matmul width
    Wep = _round_up(2 * Wp + 1, 8)         # parity-major padded cols per row

    # ---- pool-row tile height BH: big tiles, VMEM-safe, >= 2 grid steps ----
    BH = min(8, Hp)

    def _tile_vmem(bh):                    # lane-padded VMEM estimate (double buffered)
        in_b = (2 * bh + 2) * Wep * 128 * 2          # bf16 patches, lane padded
        out_b = bh * Wp * 128 * 4                    # f32 output, lane padded
        return 2 * (in_b + out_b) + Wep * 128 * 4    # + yrow scratch

    while BH > 1 and _tile_vmem(BH) > 24 * 1024 * 1024:   # safe on v7x (64 MiB/TC)
        BH = _cdiv(BH, 2)
    if N * _cdiv(Hp, BH) < 2:              # keep both v7x TensorCores busy
        BH = max(1, _cdiv(Hp, 2))
    T = _cdiv(Hp, BH)
    RB = 2 * BH + 2                        # patch rows per tile (last row unused)

    # ---- fused im2col + pool-row halo tiling, gathered directly from x (bf16) ----
    x_nhwc = jnp.transpose(x_nchw, (0, 2, 3, 1)).astype(jnp.bfloat16)
    xp = jnp.pad(x_nhwc, ((0, 0), (1, 1), (1, 1), (0, 0)))        # conv zero pad

    pr = 2 * BH * np.arange(T)[:, None] + np.arange(RB)[None, :]  # padded pool-space rows
    conv_row = np.clip(pr - 1, 0, Ho - 1).reshape(-1)             # edge replicate (pool pad)
    pc = np.concatenate([np.arange(0, 2 * Wp + 1, 2),             # even padded cols
                         np.arange(1, 2 * Wp, 2)])                # odd padded cols
    pc = np.concatenate([pc, np.full(Wep - pc.size, pc[-1], dtype=pc.dtype)])
    conv_col = np.clip(pc - 1, 0, Wo - 1)                         # edge replicate (pool pad)

    parts = []
    for kh in range(3):
        xr = jnp.take(xp, jnp.asarray(2 * conv_row + kh), axis=1)   # (N, T*RB, W+2, Cin)
        for kw in range(3):
            parts.append(jnp.take(xr, jnp.asarray(2 * conv_col + kw), axis=2))
    tiles = jnp.concatenate(parts, axis=-1)                         # (N, T*RB, Wep, 9*Cin)
    tiles = jnp.pad(tiles, ((0, 0), (0, 0), (0, 0), (0, Kp - K)))
    tiles = tiles.reshape(N * T, RB, Wep, Kp)                       # one tile per grid step

    # ---- fold eval-mode BN into the conv weight / bias (bf16 weight stream) ----
    inv_std = 1.0 / jnp.sqrt(run_var + eps)
    scale = gamma * inv_std
    bias = beta - run_mean * scale
    w_mat = jnp.transpose(w_oihw, (2, 3, 1, 0)).reshape(K, Cout) * scale[None, :]
    w_mat = jnp.pad(w_mat, ((0, Kp - K), (0, Cp - Cout))).astype(jnp.bfloat16)
    bias_row = jnp.pad(bias, (0, Cp - Cout)).reshape(1, Cp).astype(jnp.float32)

    kernel = _make_stem_kernel(BH, Wp, Cout)
    out = pl.pallas_call(
        kernel,
        out_shape=jax.ShapeDtypeStruct((N * T, BH, Wp, Cout), jnp.float32),
        grid=(N * T,),
        in_specs=[
            pl.BlockSpec((1, RB, Wep, Kp), lambda i: (i, 0, 0, 0)),
            pl.BlockSpec((Kp, Cp), lambda i: (0, 0)),
            pl.BlockSpec((1, Cp), lambda i: (0, 0)),
        ],
        out_specs=pl.BlockSpec((1, BH, Wp, Cout), lambda i: (i, 0, 0, 0)),
        scratch_shapes=[pltpu.VMEM((Wep, Cp), jnp.float32)],
        compiler_params=pltpu.CompilerParams(
            dimension_semantics=("parallel",)),
    )(tiles, w_mat, bias_row)

    # (N*T, BH, Wp, Cout) -> (N, Hp, Wp, Cout): the reshape is copy-free; only
    # the tile-padding row slice and the module's NCHW transpose remain.
    out = out.reshape(N, T * BH, Wp, Cout)[:, :Hp]
    return jnp.transpose(out, (0, 3, 1, 2))                        # NCHW


# ------------------------------ pure-JAX reference ---------------------------

def basic_stem_reference(x_nchw, w_oihw, gamma, beta, run_mean, run_var, eps=1e-5):
    conv = lax.conv_general_dilated(
        x_nchw, w_oihw, window_strides=(2, 2), padding=((1, 1), (1, 1)),
        dimension_numbers=('NCHW', 'OIHW', 'NCHW'),
        precision=lax.Precision.HIGHEST)
    inv_std = 1.0 / jnp.sqrt(run_var + eps)
    s = (gamma * inv_std).reshape(1, -1, 1, 1)
    b = (beta - run_mean * gamma * inv_std).reshape(1, -1, 1, 1)
    y = jnp.maximum(conv * s + b, 0.0)
    return lax.reduce_window(
        y, -jnp.inf, lax.max,
        window_dimensions=(1, 1, 3, 3), window_strides=(1, 1, 2, 2),
        padding=((0, 0), (0, 0), (1, 1), (1, 1)))


# ----------------------------------- main ------------------------------------

if __name__ == "__main__":
    key = jax.random.PRNGKey(0)
    kx, kw, kg, kb, km, kv = jax.random.split(key, 6)

    N, Cin, H, W = 2, 3, 16, 16
    Cout = 24

    x = jax.random.normal(kx, (N, Cin, H, W), dtype=jnp.float32)

    # c2_msra_fill: kaiming normal, fan_out = Cout * k * k, gain sqrt(2)
    fan_out = Cout * 3 * 3
    w = jax.random.normal(kw, (Cout, Cin, 3, 3), dtype=jnp.float32) * np.sqrt(2.0 / fan_out)

    # Eval-mode BatchNorm parameters / running stats.
    gamma = 1.0 + 0.1 * jax.random.normal(kg, (Cout,), dtype=jnp.float32)
    beta = 0.1 * jax.random.normal(kb, (Cout,), dtype=jnp.float32)
    run_mean = 0.1 * jax.random.normal(km, (Cout,), dtype=jnp.float32)
    run_var = 0.5 + jax.random.uniform(kv, (Cout,), dtype=jnp.float32)

    fwd = jax.jit(basic_stem_forward)
    out = jax.block_until_ready(fwd(x, w, gamma, beta, run_mean, run_var))

    ref = jax.block_until_ready(
        basic_stem_reference(x, w, gamma, beta, run_mean, run_var))

    assert out.shape == (N, Cout, H // 4, W // 4), out.shape
    # bf16 patch/weight streams (f32 accumulation): tolerance covers bf16 input
    # rounding vs the all-f32 reference.
    np.testing.assert_allclose(np.asarray(out), np.asarray(ref), rtol=2e-2, atol=2e-2)

    print("KERNEL_OK")
</pallas_src>

<mosaic_0001>
module attributes {stable_mosaic.version = 11 : i64} {
  func.func @kernel(%arg0: i32, %arg1: memref<1x10x16x32xbf16, #tpu.memory_space<vmem>>, %arg2: memref<32x128xbf16, #tpu.memory_space<vmem>>, %arg3: memref<1x128xf32, #tpu.memory_space<vmem>>, %arg4: memref<1x4x4x24xf32, #tpu.memory_space<vmem>>, %arg5: memref<16x128xf32, #tpu.memory_space<vmem>>) attributes {dimension_semantics = [#tpu.dimension_semantics<parallel>], iteration_bounds = array<i64: 2>, scalar_prefetch = 0 : i64, scratch_operands = 1 : i64, tpu.core_type = #tpu.core_type<tc>, window_params = [{transform_indices = @transform_0, window_bounds = array<i64: 1, 10, 16, 32>}, {pipeline_mode = #tpu.pipeline_mode<synchronous>, transform_indices = @transform_1, window_bounds = array<i64: 32, 128>}, {pipeline_mode = #tpu.pipeline_mode<synchronous>, transform_indices = @transform_2, window_bounds = array<i64: 1, 128>}, {transform_indices = @transform_3, window_bounds = array<i64: 1, 4, 4, 24>}]} {
    %c0 = arith.constant 0 : index
    %c0_0 = arith.constant 0 : index
    %0 = vector.load %arg2[%c0, %c0_0] : memref<32x128xbf16, #tpu.memory_space<vmem>>, vector<32x128xbf16>
    %c0_1 = arith.constant 0 : index
    %c0_2 = arith.constant 0 : index
    %1 = vector.load %arg3[%c0_1, %c0_2] : memref<1x128xf32, #tpu.memory_space<vmem>>, vector<1x128xf32>
    %c0_3 = arith.constant 0 : index
    %c0_4 = arith.constant 0 : index
    %c0_5 = arith.constant 0 : index
    %c0_6 = arith.constant 0 : index
    %2 = vector.load %arg1[%c0_3, %c0_4, %c0_5, %c0_6] : memref<1x10x16x32xbf16, #tpu.memory_space<vmem>>, vector<1x1x16x32xbf16>
    %3 = vector.shape_cast %2 : vector<1x1x16x32xbf16> to vector<16x32xbf16>
    %cst = arith.constant dense<0.000000e+00> : vector<16x128xf32>
    %4 = tpu.matmul %3, %0, %cst {dimension_numbers = #tpu.dot_dimension_numbers<[1], [0], [0], [1], [0, 0, 1, 1], [], []>} : vector<16x32xbf16>, vector<32x128xbf16>, vector<16x128xf32> -> vector<16x128xf32>
    %c0_7 = arith.constant 0 : index
    %c0_8 = arith.constant 0 : index
    %5 = vector.load %arg5[%c0_7, %c0_8] : memref<16x128xf32, #tpu.memory_space<vmem>>, vector<16x128xf32>
    tpu.vector_store %arg5[%c0_7, %c0_8], %4 {strides = array<i32>} : memref<16x128xf32, #tpu.memory_space<vmem>>, vector<16x128xf32>,
    %c0_9 = arith.constant 0 : index
    %c0_10 = arith.constant 0 : index
    %6 = vector.load %arg5[%c0_9, %c0_10] : memref<16x128xf32, #tpu.memory_space<vmem>>, vector<4x128xf32>
    %c1 = arith.constant 1 : index
    %c0_11 = arith.constant 0 : index
    %7 = vector.load %arg5[%c1, %c0_11] : memref<16x128xf32, #tpu.memory_space<vmem>>, vector<4x128xf32>
    %c5 = arith.constant 5 : index
    %c0_12 = arith.constant 0 : index
    %8 = vector.load %arg5[%c5, %c0_12] : memref<16x128xf32, #tpu.memory_space<vmem>>, vector<4x128xf32>
    %9 = arith.maximumf %6, %7 : vector<4x128xf32>
    %10 = arith.maximumf %9, %8 : vector<4x128xf32>
    %c0_13 = arith.constant 0 : index
    %c1_14 = arith.constant 1 : index
    %c0_15 = arith.constant 0 : index
    %c0_16 = arith.constant 0 : index
    %11 = vector.load %arg1[%c0_13, %c1_14, %c0_15, %c0_16] : memref<1x10x16x32xbf16, #tpu.memory_space<vmem>>, vector<1x1x16x32xbf16>
    %12 = vector.shape_cast %11 : vector<1x1x16x32xbf16> to vector<16x32xbf16>
    %cst_17 = arith.constant dense<0.000000e+00> : vector<16x128xf32>
    %13 = tpu.matmul %12, %0, %cst_17 {dimension_numbers = #tpu.dot_dimension_numbers<[1], [0], [0], [1], [0, 0, 1, 1], [], []>} : vector<16x32xbf16>, vector<32x128xbf16>, vector<16x128xf32> -> vector<16x128xf32>
    %c0_18 = arith.constant 0 : index
    %c0_19 = arith.constant 0 : index
    %14 = vector.load %arg5[%c0_18, %c0_19] : memref<16x128xf32, #tpu.memory_space<vmem>>, vector<16x128xf32>
    tpu.vector_store %arg5[%c0_18, %c0_19], %13 {strides = array<i32>} : memref<16x128xf32, #tpu.memory_space<vmem>>, vector<16x128xf32>,
    %c0_20 = arith.constant 0 : index
    %c0_21 = arith.constant 0 : index
    %15 = vector.load %arg5[%c0_20, %c0_21] : memref<16x128xf32, #tpu.memory_space<vmem>>, vector<4x128xf32>
    %c1_22 = arith.constant 1 : index
    %c0_23 = arith.constant 0 : index
    %16 = vector.load %arg5[%c1_22, %c0_23] : memref<16x128xf32, #tpu.memory_space<vmem>>, vector<4x128xf32>
    %c5_24 = arith.constant 5 : index
    %c0_25 = arith.constant 0 : index
    %17 = vector.load %arg5[%c5_24, %c0_25] : memref<16x128xf32, #tpu.memory_space<vmem>>, vector<4x128xf32>
    %18 = arith.maximumf %15, %16 : vector<4x128xf32>
    %19 = arith.maximumf %18, %17 : vector<4x128xf32>
    %c0_26 = arith.constant 0 : index
    %c2 = arith.constant 2 : index
    %c0_27 = arith.constant 0 : index
    %c0_28 = arith.constant 0 : index
    %20 = vector.load %arg1[%c0_26, %c2, %c0_27, %c0_28] : memref<1x10x16x32xbf16, #tpu.memory_space<vmem>>, vector<1x1x16x32xbf16>
    %21 = vector.shape_cast %20 : vector<1x1x16x32xbf16> to vector<16x32xbf16>
    %cst_29 = arith.constant dense<0.000000e+00> : vector<16x128xf32>
    %22 = tpu.matmul %21, %0, %cst_29 {dimension_numbers = #tpu.dot_dimension_numbers<[1], [0], [0], [1], [0, 0, 1, 1], [], []>} : vector<16x32xbf16>, vector<32x128xbf16>, vector<16x128xf32> -> vector<16x128xf32>
    %c0_30 = arith.constant 0 : index
    %c0_31 = arith.constant 0 : index
    %23 = vector.load %arg5[%c0_30, %c0_31] : memref<16x128xf32, #tpu.memory_space<vmem>>, vector<16x128xf32>
    tpu.vector_store %arg5[%c0_30, %c0_31], %22 {strides = array<i32>} : memref<16x128xf32, #tpu.memory_space<vmem>>, vector<16x128xf32>,
    %c0_32 = arith.constant 0 : index
    %c0_33 = arith.constant 0 : index
    %24 = vector.load %arg5[%c0_32, %c0_33] : memref<16x128xf32, #tpu.memory_space<vmem>>, vector<4x128xf32>
    %c1_34 = arith.constant 1 : index
    %c0_35 = arith.constant 0 : index
    %25 = vector.load %arg5[%c1_34, %c0_35] : memref<16x128xf32, #tpu.memory_space<vmem>>, vector<4x128xf32>
    %c5_36 = arith.constant 5 : index
    %c0_37 = arith.constant 0 : index
    %26 = vector.load %arg5[%c5_36, %c0_37] : memref<16x128xf32, #tpu.memory_space<vmem>>, vector<4x128xf32>
    %27 = arith.maximumf %24, %25 : vector<4x128xf32>
    %28 = arith.maximumf %27, %26 : vector<4x128xf32>
    %29 = arith.maximumf %10, %19 : vector<4x128xf32>
    %30 = arith.maximumf %29, %28 : vector<4x128xf32>
    %31 = vector.broadcast %1 : vector<1x128xf32> to vector<4x128xf32>
    %32 = arith.addf %30, %31 : vector<4x128xf32>
    %cst_38 = arith.constant 0.000000e+00 : f32
    %33 = vector.broadcast %cst_38 : f32 to vector<4x128xf32>
    %34 = arith.maximumf %32, %33 : vector<4x128xf32>
    %35 = vector.extract_strided_slice %34 {offsets = [0, 0], sizes = [4, 24], strides = [1, 1]} : vector<4x128xf32> to vector<4x24xf32>
    %c0_39 = arith.constant 0 : index
    %c0_40 = arith.constant 0 : index
    %c0_41 = arith.constant 0 : index
    %c0_42 = arith.constant 0 : index
    %36 = vector.load %arg4[%c0_39, %c0_40, %c0_41, %c0_42] : memref<1x4x4x24xf32, #tpu.memory_space<vmem>>, vector<1x1x4x24xf32>
    %37 = vector.shape_cast %36 : vector<1x1x4x24xf32> to vector<4x24xf32>
    %38 = vector.shape_cast %35 : vector<4x24xf32> to vector<1x1x4x24xf32>
    tpu.vector_store %arg4[%c0_39, %c0_40, %c0_41, %c0_42], %38 {strides = array<i32>} : memref<1x4x4x24xf32, #tpu.memory_space<vmem>>, vector<1x1x4x24xf32>,
    %c0_43 = arith.constant 0 : index
    %c3 = arith.constant 3 : index
    %c0_44 = arith.constant 0 : index
    %c0_45 = arith.constant 0 : index
    %39 = vector.load %arg1[%c0_43, %c3, %c0_44, %c0_45] : memref<1x10x16x32xbf16, #tpu.memory_space<vmem>>, vector<1x1x16x32xbf16>
    %40 = vector.shape_cast %39 : vector<1x1x16x32xbf16> to vector<16x32xbf16>
    %cst_46 = arith.constant dense<0.000000e+00> : vector<16x128xf32>
    %41 = tpu.matmul %40, %0, %cst_46 {dimension_numbers = #tpu.dot_dimension_numbers<[1], [0], [0], [1], [0, 0, 1, 1], [], []>} : vector<16x32xbf16>, vector<32x128xbf16>, vector<16x128xf32> -> vector<16x128xf32>
    %c0_47 = arith.constant 0 : index
    %c0_48 = arith.constant 0 : index
    %42 = vector.load %arg5[%c0_47, %c0_48] : memref<16x128xf32, #tpu.memory_space<vmem>>, vector<16x128xf32>
    tpu.vector_store %arg5[%c0_47, %c0_48], %41 {strides = array<i32>} : memref<16x128xf32, #tpu.memory_space<vmem>>, vector<16x128xf32>,
    %c0_49 = arith.constant 0 : index
    %c0_50 = arith.constant 0 : index
    %43 = vector.load %arg5[%c0_49, %c0_50] : memref<16x128xf32, #tpu.memory_space<vmem>>, vector<4x128xf32>
    %c1_51 = arith.constant 1 : index
    %c0_52 = arith.constant 0 : index
    %44 = vector.load %arg5[%c1_51, %c0_52] : memref<16x128xf32, #tpu.memory_space<vmem>>, vector<4x128xf32>
    %c5_53 = arith.constant 5 : index
    %c0_54 = arith.constant 0 : index
    %45 = vector.load %arg5[%c5_53, %c0_54] : memref<16x128xf32, #tpu.memory_space<vmem>>, vector<4x128xf32>
    %46 = arith.maximumf %43, %44 : vector<4x128xf32>
    %47 = arith.maximumf %46, %45 : vector<4x128xf32>
    %c0_55 = arith.constant 0 : index
    %c4 = arith.constant 4 : index
    %c0_56 = arith.constant 0 : index
    %c0_57 = arith.constant 0 : index
    %48 = vector.load %arg1[%c0_55, %c4, %c0_56, %c0_57] : memref<1x10x16x32xbf16, #tpu.memory_space<vmem>>, vector<1x1x16x32xbf16>
    %49 = vector.shape_cast %48 : vector<1x1x16x32xbf16> to vector<16x32xbf16>
    %cst_58 = arith.constant dense<0.000000e+00> : vector<16x128xf32>
    %50 = tpu.matmul %49, %0, %cst_58 {dimension_numbers = #tpu.dot_dimension_numbers<[1], [0], [0], [1], [0, 0, 1, 1], [], []>} : vector<16x32xbf16>, vector<32x128xbf16>, vector<16x128xf32> -> vector<16x128xf32>
    %c0_59 = arith.constant 0 : index
    %c0_60 = arith.constant 0 : index
    %51 = vector.load %arg5[%c0_59, %c0_60] : memref<16x128xf32, #tpu.memory_space<vmem>>, vector<16x128xf32>
    tpu.vector_store %arg5[%c0_59, %c0_60], %50 {strides = array<i32>} : memref<16x128xf32, #tpu.memory_space<vmem>>, vector<16x128xf32>,
    %c0_61 = arith.constant 0 : index
    %c0_62 = arith.constant 0 : index
    %52 = vector.load %arg5[%c0_61, %c0_62] : memref<16x128xf32, #tpu.memory_space<vmem>>, vector<4x128xf32>
    %c1_63 = arith.constant 1 : index
    %c0_64 = arith.constant 0 : index
    %53 = vector.load %arg5[%c1_63, %c0_64] : memref<16x128xf32, #tpu.memory_space<vmem>>, vector<4x128xf32>
    %c5_65 = arith.constant 5 : index
    %c0_66 = arith.constant 0 : index
    %54 = vector.load %arg5[%c5_65, %c0_66] : memref<16x128xf32, #tpu.memory_space<vmem>>, vector<4x128xf32>
    %55 = arith.maximumf %52, %53 : vector<4x128xf32>
    %56 = arith.maximumf %55, %54 : vector<4x128xf32>
    %57 = arith.maximumf %28, %47 : vector<4x128xf32>
    %58 = arith.maximumf %57, %56 : vector<4x128xf32>
    %59 = vector.broadcast %1 : vector<1x128xf32> to vector<4x128xf32>
    %60 = arith.addf %58, %59 : vector<4x128xf32>
    %cst_67 = arith.constant 0.000000e+00 : f32
    %61 = vector.broadcast %cst_67 : f32 to vector<4x128xf32>
    %62 = arith.maximumf %60, %61 : vector<4x128xf32>
    %63 = vector.extract_strided_slice %62 {offsets = [0, 0], sizes = [4, 24], strides = [1, 1]} : vector<4x128xf32> to vector<4x24xf32>
    %c0_68 = arith.constant 0 : index
    %c1_69 = arith.constant 1 : index
    %c0_70 = arith.constant 0 : index
    %c0_71 = arith.constant 0 : index
    %64 = vector.load %arg4[%c0_68, %c1_69, %c0_70, %c0_71] : memref<1x4x4x24xf32, #tpu.memory_space<vmem>>, vector<1x1x4x24xf32>
    %65 = vector.shape_cast %64 : vector<1x1x4x24xf32> to vector<4x24xf32>
    %66 = vector.shape_cast %63 : vector<4x24xf32> to vector<1x1x4x24xf32>
    tpu.vector_store %arg4[%c0_68, %c1_69, %c0_70, %c0_71], %66 {strides = array<i32>} : memref<1x4x4x24xf32, #tpu.memory_space<vmem>>, vector<1x1x4x24xf32>,
    %c0_72 = arith.constant 0 : index
    %c5_73 = arith.constant 5 : index
    %c0_74 = arith.constant 0 : index
    %c0_75 = arith.constant 0 : index
    %67 = vector.load %arg1[%c0_72, %c5_73, %c0_74, %c0_75] : memref<1x10x16x32xbf16, #tpu.memory_space<vmem>>, vector<1x1x16x32xbf16>
    %68 = vector.shape_cast %67 : vector<1x1x16x32xbf16> to vector<16x32xbf16>
    %cst_76 = arith.constant dense<0.000000e+00> : vector<16x128xf32>
    %69 = tpu.matmul %68, %0, %cst_76 {dimension_numbers = #tpu.dot_dimension_numbers<[1], [0], [0], [1], [0, 0, 1, 1], [], []>} : vector<16x32xbf16>, vector<32x128xbf16>, vector<16x128xf32> -> vector<16x128xf32>
    %c0_77 = arith.constant 0 : index
    %c0_78 = arith.constant 0 : index
    %70 = vector.load %arg5[%c0_77, %c0_78] : memref<16x128xf32, #tpu.memory_space<vmem>>, vector<16x128xf32>
    tpu.vector_store %arg5[%c0_77, %c0_78], %69 {strides = array<i32>} : memref<16x128xf32, #tpu.memory_space<vmem>>, vector<16x128xf32>,
    %c0_79 = arith.constant 0 : index
    %c0_80 = arith.constant 0 : index
    %71 = vector.load %arg5[%c0_79, %c0_80] : memref<16x128xf32, #tpu.memory_space<vmem>>, vector<4x128xf32>
    %c1_81 = arith.constant 1 : index
    %c0_82 = arith.constant 0 : index
    %72 = vector.load %arg5[%c1_81, %c0_82] : memref<16x128xf32, #tpu.memory_space<vmem>>, vector<4x128xf32>
    %c5_83 = arith.constant 5 : index
    %c0_84 = arith.constant 0 : index
    %73 = vector.load %arg5[%c5_83, %c0_84] : memref<16x128xf32, #tpu.memory_space<vmem>>, vector<4x128xf32>
    %74 = arith.maximumf %71, %72 : vector<4x128xf32>
    %75 = arith.maximumf %74, %73 : vector<4x128xf32>
    %c0_85 = arith.constant 0 : index
    %c6 = arith.constant 6 : index
    %c0_86 = arith.constant 0 : index
    %c0_87 = arith.constant 0 : index
    %76 = vector.load %arg1[%c0_85, %c6, %c0_86, %c0_87] : memref<1x10x16x32xbf16, #tpu.memory_space<vmem>>, vector<1x1x16x32xbf16>
    %77 = vector.shape_cast %76 : vector<1x1x16x32xbf16> to vector<16x32xbf16>
    %cst_88 = arith.constant dense<0.000000e+00> : vector<16x128xf32>
    %78 = tpu.matmul %77, %0, %cst_88 {dimension_numbers = #tpu.dot_dimension_numbers<[1], [0], [0], [1], [0, 0, 1, 1], [], []>} : vector<16x32xbf16>, vector<32x128xbf16>, vector<16x128xf32> -> vector<16x128xf32>
    %c0_89 = arith.constant 0 : index
    %c0_90 = arith.constant 0 : index
    %79 = vector.load %arg5[%c0_89, %c0_90] : memref<16x128xf32, #tpu.memory_space<vmem>>, vector<16x128xf32>
    tpu.vector_store %arg5[%c0_89, %c0_90], %78 {strides = array<i32>} : memref<16x128xf32, #tpu.memory_space<vmem>>, vector<16x128xf32>,
    %c0_91 = arith.constant 0 : index
    %c0_92 = arith.constant 0 : index
    %80 = vector.load %arg5[%c0_91, %c0_92] : memref<16x128xf32, #tpu.memory_space<vmem>>, vector<4x128xf32>
    %c1_93 = arith.constant 1 : index
    %c0_94 = arith.constant 0 : index
    %81 = vector.load %arg5[%c1_93, %c0_94] : memref<16x128xf32, #tpu.memory_space<vmem>>, vector<4x128xf32>
    %c5_95 = arith.constant 5 : index
    %c0_96 = arith.constant 0 : index
    %82 = vector.load %arg5[%c5_95, %c0_96] : memref<16x128xf32, #tpu.memory_space<vmem>>, vector<4x128xf32>
    %83 = arith.maximumf %80, %81 : vector<4x128xf32>
    %84 = arith.maximumf %83, %82 : vector<4x128xf32>
    %85 = arith.maximumf %56, %75 : vector<4x128xf32>
    %86 = arith.maximumf %85, %84 : vector<4x128xf32>
    %87 = vector.broadcast %1 : vector<1x128xf32> to vector<4x128xf32>
    %88 = arith.addf %86, %87 : vector<4x128xf32>
    %cst_97 = arith.constant 0.000000e+00 : f32
    %89 = vector.broadcast %cst_97 : f32 to vector<4x128xf32>
    %90 = arith.maximumf %88, %89 : vector<4x128xf32>
    %91 = vector.extract_strided_slice %90 {offsets = [0, 0], sizes = [4, 24], strides = [1, 1]} : vector<4x128xf32> to vector<4x24xf32>
    %c0_98 = arith.constant 0 : index
    %c2_99 = arith.constant 2 : index
    %c0_100 = arith.constant 0 : index
    %c0_101 = arith.constant 0 : index
    %92 = vector.load %arg4[%c0_98, %c2_99, %c0_100, %c0_101] : memref<1x4x4x24xf32, #tpu.memory_space<vmem>>, vector<1x1x4x24xf32>
    %93 = vector.shape_cast %92 : vector<1x1x4x24xf32> to vector<4x24xf32>
    %94 = vector.shape_cast %91 : vector<4x24xf32> to vector<1x1x4x24xf32>
    tpu.vector_store %arg4[%c0_98, %c2_99, %c0_100, %c0_101], %94 {strides = array<i32>} : memref<1x4x4x24xf32, #tpu.memory_space<vmem>>, vector<1x1x4x24xf32>,
    %c0_102 = arith.constant 0 : index
    %c7 = arith.constant 7 : index
    %c0_103 = arith.constant 0 : index
    %c0_104 = arith.constant 0 : index
    %95 = vector.load %arg1[%c0_102, %c7, %c0_103, %c0_104] : memref<1x10x16x32xbf16, #tpu.memory_space<vmem>>, vector<1x1x16x32xbf16>
    %96 = vector.shape_cast %95 : vector<1x1x16x32xbf16> to vector<16x32xbf16>
    %cst_105 = arith.constant dense<0.000000e+00> : vector<16x128xf32>
    %97 = tpu.matmul %96, %0, %cst_105 {dimension_numbers = #tpu.dot_dimension_numbers<[1], [0], [0], [1], [0, 0, 1, 1], [], []>} : vector<16x32xbf16>, vector<32x128xbf16>, vector<16x128xf32> -> vector<16x128xf32>
    %c0_106 = arith.constant 0 : index
    %c0_107 = arith.constant 0 : index
    %98 = vector.load %arg5[%c0_106, %c0_107] : memref<16x128xf32, #tpu.memory_space<vmem>>, vector<16x128xf32>
    tpu.vector_store %arg5[%c0_106, %c0_107], %97 {strides = array<i32>} : memref<16x128xf32, #tpu.memory_space<vmem>>, vector<16x128xf32>,
    %c0_108 = arith.constant 0 : index
    %c0_109 = arith.constant 0 : index
    %99 = vector.load %arg5[%c0_108, %c0_109] : memref<16x128xf32, #tpu.memory_space<vmem>>, vector<4x128xf32>
    %c1_110 = arith.constant 1 : index
    %c0_111 = arith.constant 0 : index
    %100 = vector.load %arg5[%c1_110, %c0_111] : memref<16x128xf32, #tpu.memory_space<vmem>>, vector<4x128xf32>
    %c5_112 = arith.constant 5 : index
    %c0_113 = arith.constant 0 : index
    %101 = vector.load %arg5[%c5_112, %c0_113] : memref<16x128xf32, #tpu.memory_space<vmem>>, vector<4x128xf32>
    %102 = arith.maximumf %99, %100 : vector<4x128xf32>
    %103 = arith.maximumf %102, %101 : vector<4x128xf32>
    %c0_114 = arith.constant 0 : index
    %c8 = arith.constant 8 : index
    %c0_115 = arith.constant 0 : index
    %c0_116 = arith.constant 0 : index
    %104 = vector.load %arg1[%c0_114, %c8, %c0_115, %c0_116] : memref<1x10x16x32xbf16, #tpu.memory_space<vmem>>, vector<1x1x16x32xbf16>
    %105 = vector.shape_cast %104 : vector<1x1x16x32xbf16> to vector<16x32xbf16>
    %cst_117 = arith.constant dense<0.000000e+00> : vector<16x128xf32>
    %106 = tpu.matmul %105, %0, %cst_117 {dimension_numbers = #tpu.dot_dimension_numbers<[1], [0], [0], [1], [0, 0, 1, 1], [], []>} : vector<16x32xbf16>, vector<32x128xbf16>, vector<16x128xf32> -> vector<16x128xf32>
    %c0_118 = arith.constant 0 : index
    %c0_119 = arith.constant 0 : index
    %107 = vector.load %arg5[%c0_118, %c0_119] : memref<16x128xf32, #tpu.memory_space<vmem>>, vector<16x128xf32>
    tpu.vector_store %arg5[%c0_118, %c0_119], %106 {strides = array<i32>} : memref<16x128xf32, #tpu.memory_space<vmem>>, vector<16x128xf32>,
    %c0_120 = arith.constant 0 : index
    %c0_121 = arith.constant 0 : index
    %108 = vector.load %arg5[%c0_120, %c0_121] : memref<16x128xf32, #tpu.memory_space<vmem>>, vector<4x128xf32>
    %c1_122 = arith.constant 1 : index
    %c0_123 = arith.constant 0 : index
    %109 = vector.load %arg5[%c1_122, %c0_123] : memref<16x128xf32, #tpu.memory_space<vmem>>, vector<4x128xf32>
    %c5_124 = arith.constant 5 : index
    %c0_125 = arith.constant 0 : index
    %110 = vector.load %arg5[%c5_124, %c0_125] : memref<16x128xf32, #tpu.memory_space<vmem>>, vector<4x128xf32>
    %111 = arith.maximumf %108, %109 : vector<4x128xf32>
    %112 = arith.maximumf %111, %110 : vector<4x128xf32>
    %113 = arith.maximumf %84, %103 : vector<4x128xf32>
    %114 = arith.maximumf %113, %112 : vector<4x128xf32>
    %115 = vector.broadcast %1 : vector<1x128xf32> to vector<4x128xf32>
    %116 = arith.addf %114, %115 : vector<4x128xf32>
    %cst_126 = arith.constant 0.000000e+00 : f32
    %117 = vector.broadcast %cst_126 : f32 to vector<4x128xf32>
    %118 = arith.maximumf %116, %117 : vector<4x128xf32>
    %119 = vector.extract_strided_slice %118 {offsets = [0, 0], sizes = [4, 24], strides = [1, 1]} : vector<4x128xf32> to vector<4x24xf32>
    %c0_127 = arith.constant 0 : index
    %c3_128 = arith.constant 3 : index
    %c0_129 = arith.constant 0 : index
    %c0_130 = arith.constant 0 : index
    %120 = vector.load %arg4[%c0_127, %c3_128, %c0_129, %c0_130] : memref<1x4x4x24xf32, #tpu.memory_space<vmem>>, vector<1x1x4x24xf32>
    %121 = vector.shape_cast %120 : vector<1x1x4x24xf32> to vector<4x24xf32>
    %122 = vector.shape_cast %119 : vector<4x24xf32> to vector<1x1x4x24xf32>
    tpu.vector_store %arg4[%c0_127, %c3_128, %c0_129, %c0_130], %122 {strides = array<i32>} : memref<1x4x4x24xf32, #tpu.memory_space<vmem>>, vector<1x1x4x24xf32>,
    return
  }
  func.func @transform_0(%arg0: i32) -> (i32, i32, i32, i32) {
    %c0_i32 = arith.constant 0 : i32
    %c0_i32_0 = arith.constant 0 : i32
    %c0_i32_1 = arith.constant 0 : i32
    %c0_i32_2 = arith.constant 0 : i32
    return %arg0, %c0_i32, %c0_i32_0, %c0_i32_1 : i32, i32, i32, i32
  }
  func.func @transform_1(%arg0: i32) -> (i32, i32) {
    %c0_i32 = arith.constant 0 : i32
    %c0_i32_0 = arith.constant 0 : i32
    %c0_i32_1 = arith.constant 0 : i32
    return %c0_i32, %c0_i32_0 : i32, i32
  }
  func.func @transform_2(%arg0: i32) -> (i32, i32) {
    %c0_i32 = arith.constant 0 : i32
    %c0_i32_0 = arith.constant 0 : i32
    %c0_i32_1 = arith.constant 0 : i32
    return %c0_i32, %c0_i32_0 : i32, i32
  }
  func.func @transform_3(%arg0: i32) -> (i32, i32, i32, i32) {
    %c0_i32 = arith.constant 0 : i32
    %c0_i32_0 = arith.constant 0 : i32
    %c0_i32_1 = arith.constant 0 : i32
    %c0_i32_2 = arith.constant 0 : i32
    return %arg0, %c0_i32, %c0_i32_0, %c0_i32_1 : i32, i32, i32, i32
  }
}

</mosaic_0001>

<llo_original>
// kernel: basic_stem_forward.1
$region0: #{basic_stem_forward.1}
  #allocation0 [shape = 'u32[]', space=smem, size = 0x4, offset = 0x4, fixed_abs, tag = 'smem constant byte address 0x4 - core index']
  #allocation1 [shape = 'u32[72,128]{1,0:T(1,128)}', space=vmem, size = 0x9000, scoped, tag = 'internal scratch']
  #allocation2 [shape = 'f32[16,128]{1,0:T(8,128)}', space=vmem, size = 0x2000, scoped, tag = 'scratch operand']
  %s0 = inlined_call_operand.vmem [shape: bf16[2,10,16,32], index: 0, kind: input, shape index: {}]
  %s1 = inlined_call_operand.vmem [shape: bf16[32,128], index: 1, kind: input, shape index: {}]
  %s2 = inlined_call_operand.vmem [shape: f32[1,128], index: 2, kind: input, shape index: {}]
  %s3 = inlined_call_operand.hbm [shape: f32[2,4,4,24], index: 3, kind: output, shape index: {}]
  %s4 = sld [smem:[#allocation0]]
  $region45: #{basic_stem_forward.1} parent=0
    _
  %s6 = ssub.s32 1, %s4
  %s7 = scalar_select 0, %s6, %s4
  $region1: #{basic_stem_forward.1} parent=0
    #allocation3 [shape = 'u8[16384]{0}', space=vmem, size = 0x4000, scoped, tag = 'output window, operand 0']
    #allocation4 [shape = 's32[2]{0}', space=sflag, size = 0x8, scoped, tag = 'scoped memory for basic_stem_forward.1']
    %8 = vsyncpa [#allocation4], 0
    %s9 = scalar_lea.sflag [#allocation4], 1
    %10 = vsyncpa %s9, 0
    loop: start=0, step=1, limit=4
    $region2: #{basic_stem_forward.1} parent=1 // loop_pre_header
      _
    $region3: #{basic_stem_forward.1} parent=1 // loop_header
      %s12 = sphi 0, %s16
      %p13 = scmp.ge.s32.totalorder %s12, 4
      %s22 = sphi 0, %s24
      %s25 = sphi 0, %s22
      %s26 = sphi 0, %s25
      %s42 = sphi 0, %s26
      %s46 = sphi 0, %s46
      %s48 = sphi 0, %s46
      %s49 = sphi 0, %s48
      %s63 = sphi 0, %s49
      %s67 = sphi 0, %s67
      %s69 = sphi 0, %s67
      %s70 = sphi 0, %s69
      %s84 = sphi 0, %s70
      %s90 = sphi 0, %s92
      %s93 = sphi 0, %s90
      %s94 = sphi 0, %s93
      %s110 = sphi 0, %s94
    $region4: #{basic_stem_forward.1} parent=1 // loop_header_branch
      %15 = sbr.rel (%p13) target = $region8
    $region5: #{basic_stem_forward.1} parent=1 // loop_body
      %s17 = ssub.s32 %s12, 1
      %s18 = ssub.s32 %s12, 2
      %s19 = sadd.s32 %s12, 1
      %s20 = ssub.s32 %s12, %s19
      %p21 = scmp.eq.s32.totalorder %s20, 0
      %s23 = sadd.s32 %s22, 1
      %s24 = scalar_select %p21, %s22, %s23
      %p27 = pneg %p21
      %p28 = scmp.eq.s32.totalorder %s12, 1
      %p29 = por %p27, %p28
      %p30 = scmp.ne.s32.totalorder %s22, %s25
      %p31 = scmp.eq.s32.totalorder %s12, 0
      %p32 = por %p30, %p31
      %p33 = scmp.ne.s32.totalorder %s22, %s25
      %p34 = scmp.eq.s32.totalorder %s17, 1
      %p35 = por %p33, %p34
      %p36 = scmp.ne.s32.totalorder %s25, %s26
      %p37 = scmp.eq.s32.totalorder %s17, 0
      %p38 = por %p36, %p37
      %p39 = scmp.ne.s32.totalorder %s25, %s26
      %p40 = scmp.eq.s32.totalorder %s18, 1
      %p41 = por %p39, %p40
      %p43 = scmp.ne.s32.totalorder %s26, %s42
      %p44 = scmp.eq.s32.totalorder %s18, 0
      %p45 = por %p43, %p44
      %s47 = sadd.s32 %s46, 1
      %p50 = scmp.eq.s32.totalorder %s12, 1
      %p51 = scmp.ne.s32.totalorder %s46, %s48
      %p52 = scmp.eq.s32.totalorder %s12, 0
      %p53 = por %p51, %p52
      %p54 = scmp.ne.s32.totalorder %s46, %s48
      %p55 = scmp.eq.s32.totalorder %s17, 1
      %p56 = por %p54, %p55
      %p57 = scmp.ne.s32.totalorder %s48, %s49
      %p58 = scmp.eq.s32.totalorder %s17, 0
      %p59 = por %p57, %p58
      %p60 = scmp.ne.s32.totalorder %s48, %s49
      %p61 = scmp.eq.s32.totalorder %s18, 1
      %p62 = por %p60, %p61
      %p64 = scmp.ne.s32.totalorder %s49, %s63
      %p65 = scmp.eq.s32.totalorder %s18, 0
      %p66 = por %p64, %p65
      %s68 = sadd.s32 %s67, 1
      %p71 = scmp.eq.s32.totalorder %s12, 1
      %p72 = scmp.ne.s32.totalorder %s67, %s69
      %p73 = scmp.eq.s32.totalorder %s12, 0
      %p74 = por %p72, %p73
      %p75 = scmp.ne.s32.totalorder %s67, %s69
      %p76 = scmp.eq.s32.totalorder %s17, 1
      %p77 = por %p75, %p76
      %p78 = scmp.ne.s32.totalorder %s69, %s70
      %p79 = scmp.eq.s32.totalorder %s17, 0
      %p80 = por %p78, %p79
      %p81 = scmp.ne.s32.totalorder %s69, %s70
      %p82 = scmp.eq.s32.totalorder %s18, 1
      %p83 = por %p81, %p82
      %p85 = scmp.ne.s32.totalorder %s70, %s84
      %p86 = scmp.eq.s32.totalorder %s18, 0
      %p87 = por %p85, %p86
      %s88 = ssub.s32 %s12, %s19
      %p89 = scmp.eq.s32.totalorder %s88, 0
      %s91 = sadd.s32 %s90, 1
      %s92 = scalar_select %p89, %s90, %s91
      %p95 = pneg %p89
      %p96 = scmp.eq.s32.totalorder %s12, 1
      %p97 = por %p95, %p96
      %p98 = scmp.ne.s32.totalorder %s90, %s93
      %p99 = scmp.eq.s32.totalorder %s12, 0
      %p100 = por %p98, %p99
      %p101 = scmp.ne.s32.totalorder %s90, %s93
      %p102 = scmp.eq.s32.totalorder %s17, 1
      %p103 = por %p101, %p102
      %p104 = scmp.ne.s32.totalorder %s93, %s94
      %p105 = scmp.eq.s32.totalorder %s17, 0
      %p106 = por %p104, %p105
      %p107 = scmp.ne.s32.totalorder %s93, %s94
      %p108 = scmp.eq.s32.totalorder %s18, 1
      %p109 = por %p107, %p108
      %p111 = scmp.ne.s32.totalorder %s94, %s110
      %p112 = scmp.eq.s32.totalorder %s18, 0
      %p113 = por %p111, %p112
      %p114 = scmp.le.s32.totalorder 1, %s12
      %p115 = scmp.lt.s32.totalorder %s12, 3
      %p116 = pnand %p114, %p115
      %p117 = pneg %p116
      // Predicated region
      $region9: #{basic_stem_forward.1} parent=5 // pred_check
        _
      $region10: #{basic_stem_forward.1} parent=5 // pred_check_branch
        %119 = sbr.rel (%p116) target = $region12
      $region11: #{basic_stem_forward.1} parent=5 // pred_region
        %s120 = ssub.s32 %s12, 1
        // Predicated region
        $region13: #{basic_stem_forward.1} parent=11 // pred_check
          %p121 = pneg %p59
        $region14: #{basic_stem_forward.1} parent=11 // pred_check_branch
          %123 = sbr.rel (%p121) target = $region16
        $region15: #{basic_stem_forward.1} parent=11 // pred_region
          _
        $region16: #{basic_stem_forward.1} parent=11 // pred_fallthru
          _
        // Predicated region
        $region17: #{basic_stem_forward.1} parent=11 // pred_check
          %p124 = pneg %p80
        $region18: #{basic_stem_forward.1} parent=11 // pred_check_branch
          %126 = sbr.rel (%p124) target = $region20
        $region19: #{basic_stem_forward.1} parent=11 // pred_region
          _
        $region20: #{basic_stem_forward.1} parent=11 // pred_fallthru
          _
      $region12: #{basic_stem_forward.1} parent=5 // pred_fallthru
        _
      %p127 = scmp.lt.s32.totalorder %s12, 2
      // Predicated region
      $region21: #{basic_stem_forward.1} parent=5 // pred_check
        %p128 = pneg %p127
      $region22: #{basic_stem_forward.1} parent=5 // pred_check_branch
        %130 = sbr.rel (%p128) target = $region24
      $region23: #{basic_stem_forward.1} parent=5 // pred_region
        // Predicated region
        $region25: #{basic_stem_forward.1} parent=23 // pred_check
          %p131 = pneg %p32
        $region26: #{basic_stem_forward.1} parent=23 // pred_check_branch
          %133 = sbr.rel (%p131) target = $region28
        $region27: #{basic_stem_forward.1} parent=23 // pred_region
          %p134 = scmp.lt.s32.totalorder %s12, 1
          %s135 = scalar_select %p134, %s12, 1
          %s136 = smul.addr %s135, 20
          %s137 = smul.addr %s136, 4
          %s138 = scalar_lea.vmem %s0, %s137
        $region28: #{basic_stem_forward.1} parent=23 // pred_fallthru
          _
      $region24: #{basic_stem_forward.1} parent=5 // pred_fallthru
        _
      %p139 = scmp.le.s32.totalorder 1, %s12
      %p140 = scmp.lt.s32.totalorder %s12, 3
      %p141 = pnand %p139, %p140
      %p142 = pneg %p141
      // Predicated region
      $region29: #{basic_stem_forward.1} parent=5 // pred_check
        _
      $region30: #{basic_stem_forward.1} parent=5 // pred_check_branch
        %144 = sbr.rel (%p141) target = $region32
      $region31: #{basic_stem_forward.1} parent=5 // pred_region
        %s145 = ssub.s32 %s12, 1
        %p146 = scmp.lt.s32.totalorder %s17, 1
        %s147 = scalar_select %p146, %s17, 1
        %s148 = smul.addr %s147, 20
        %s149 = smul.addr %s148, 4
        %s150 = scalar_lea.vmem %s0, %s149
        %p151 = pneg %p38
        %p152 = pneg %p35
        %p153 = pneg %p59
        %p154 = pneg %p56
        %p155 = pneg %p80
        %p156 = pneg %p77
        %p157 = pneg %p106
        %p158 = pneg %p103
        %s159 = sand.u32 %s93, 1
        %s160 = scalar_lea.sflag [#allocation4], %s159
        %s161 = sand.u32 %s93, 1
        %s162 = smul.addr %s161, 16
        %s163 = scalar_lea.vmem [#allocation3], %s162
        %p164 = scmp.lt.s32.totalorder %s17, 1
        %s165 = scalar_select %p164, %s17, 1
        %s166 = smul.addr %s165, 20
        %s167 = smul.addr %s166, 4
        %s168 = scalar_lea.vmem %s0, %s167
        %v170 = vld [vmem:[%s1] sm:$0xf]
        %v171 = vld [vmem:[%s1 + $0x4] sm:$0xf]
        %v172 = vld [vmem:[%s1 + $0x8] sm:$0xf]
        %v173 = vld [vmem:[%s1 + $0xc] sm:$0xf]
        %v174 = vld [vmem:[%s2] sm:$0x1]
        %v175 = vld [vmem:[%s168] sm:$0xf]
        %v176 = vld [vmem:[%s168 + $0x4] sm:$0xf]
        %v179 = vunpack.c.l.b16 %v175
        %v180 = vunpack.c.l.b16 %v176
        %v181 = vpack.c.b16 %v180, %v179
        %v186 = vunpack.c.l.b16 %v170
        %v187 = vunpack.c.l.b16 %v171
        %v188 = vunpack.c.l.b16 %v172
        %v189 = vunpack.c.l.b16 %v173
        %v190 = vpack.c.b16 %v187, %v186
        %v191 = vpack.c.b16 %v189, %v188
        %vm194 = vcmask 261120
        %v196 = vsel %vm194, %v181, 0
        %198 = vmatpush.bf16.msra.mxu0 0
        %199 = vmatpush.bf16.msra.mxu0 0
        %200 = vmatpush.bf16.msra.mxu0 0
        %201 = vmatpush.bf16.msra.mxu0 0
        %202 = vmatpush.bf16.msra.mxu0 0
        %203 = vmatpush.bf16.msra.mxu0 0
        %204 = vmatpush.bf16.msra.mxu0 %v191
        %205 = vmatpush.bf16.msra.mxu0 %v190
        %206 = vmatmul.bf16.gmra.mxu0 %v196
        %v207 = vpop.f32.mrf.mxu0
        %v208 = vadd.f32 0.0, %v207
        %v209 = vpop.f32.mrf.mxu0
        %v210 = vadd.f32 0.0, %v209
        %211 = vdwg.mxu0
        %212 = vst [vmem:[#allocation2] sm:$0xff] %v208
        %213 = vst [vmem:[#allocation2 + $0x8] sm:$0xff] %v210
        %v214 = vld [vmem:[#allocation2] sm:$0xf]
        %v215 = vld [vmem:[#allocation2 + $0x1] sm:$0xf]
        %v216 = vld [vmem:[#allocation2 + $0x5] sm:$0xf]
        %v217 = vmax.f32 %v214, %v215
        %v218 = vmax.f32 %v217, %v216
        %s219 = scalar_lea.vmem %s168, 8
        %v220 = vld [vmem:[%s219] sm:$0xf]
        %v221 = vld [vmem:[%s219 + $0x4] sm:$0xf]
        %v224 = vunpack.c.l.b16 %v220
        %v225 = vunpack.c.l.b16 %v221
        %v226 = vpack.c.b16 %v225, %v224
        %v228 = vsel %vm194, %v226, 0
        %230 = vmatpush.bf16.msra.mxu0 0
        %231 = vmatpush.bf16.msra.mxu0 0
        %232 = vmatpush.bf16.msra.mxu0 0
        %233 = vmatpush.bf16.msra.mxu0 0
        %234 = vmatpush.bf16.msra.mxu0 0
        %235 = vmatpush.bf16.msra.mxu0 0
        %236 = vmatpush.bf16.msra.mxu0 %v191
        %237 = vmatpush.bf16.msra.mxu0 %v190
        %238 = vmatmul.bf16.gmra.mxu0 %v228
        %v239 = vpop.f32.mrf.mxu0
        %v240 = vadd.f32 0.0, %v239
        %v241 = vpop.f32.mrf.mxu0
        %v242 = vadd.f32 0.0, %v241
        %243 = vdwg.mxu0
        %244 = vst [vmem:[#allocation2] sm:$0xff] %v240
        %245 = vst [vmem:[#allocation2 + $0x8] sm:$0xff] %v242
        %v246 = vld [vmem:[#allocation2] sm:$0xf]
        %v247 = vld [vmem:[#allocation2 + $0x1] sm:$0xf]
        %v248 = vld [vmem:[#allocation2 + $0x5] sm:$0xf]
        %v249 = vmax.f32 %v246, %v247
        %v250 = vmax.f32 %v249, %v248
        %s251 = scalar_lea.vmem %s168, 16
        %v252 = vld [vmem:[%s251] sm:$0xf]
        %v253 = vld [vmem:[%s251 + $0x4] sm:$0xf]
        %v256 = vunpack.c.l.b16 %v252
        %v257 = vunpack.c.l.b16 %v253
        %v258 = vpack.c.b16 %v257, %v256
        %v260 = vsel %vm194, %v258, 0
        %262 = vmatpush.bf16.msra.mxu0 0
        %263 = vmatpush.bf16.msra.mxu0 0
        %264 = vmatpush.bf16.msra.mxu0 0
        %265 = vmatpush.bf16.msra.mxu0 0
        %266 = vmatpush.bf16.msra.mxu0 0
        %267 = vmatpush.bf16.msra.mxu0 0
        %268 = vmatpush.bf16.msra.mxu0 %v191
        %269 = vmatpush.bf16.msra.mxu0 %v190
        %270 = vmatmul.bf16.gmra.mxu0 %v260
        %v271 = vpop.f32.mrf.mxu0
        %v272 = vadd.f32 0.0, %v271
        %v273 = vpop.f32.mrf.mxu0
        %v274 = vadd.f32 0.0, %v273
        %275 = vdwg.mxu0
        %276 = vst [vmem:[#allocation2] sm:$0xff] %v272
        %277 = vst [vmem:[#allocation2 + $0x8] sm:$0xff] %v274
        %v278 = vld [vmem:[#allocation2] sm:$0xf]
        %v279 = vld [vmem:[#allocation2 + $0x1] sm:$0xf]
        %v280 = vld [vmem:[#allocation2 + $0x5] sm:$0xf]
        %v281 = vmax.f32 %v278, %v279
        %v282 = vmax.f32 %v281, %v280
        %v283 = vmax.f32 %v218, %v250
        %v284 = vmax.f32 %v283, %v282
        %v286 = vperm.slane %v174, 0
        %v288 = vadd.f32 %v284, %v286
        %v289 = vmax.f32 %v288, 0.0
        %vm290 = vcmask 191488
        %291 = vst.msk [vmem:[%s163] sm:$0xf] %vm290, %v289
        %s292 = scalar_lea.vmem %s168, 24
        %v293 = vld [vmem:[%s292] sm:$0xf]
        %v294 = vld [vmem:[%s292 + $0x4] sm:$0xf]
        %v297 = vunpack.c.l.b16 %v293
        %v298 = vunpack.c.l.b16 %v294
        %v299 = vpack.c.b16 %v298, %v297
        %v301 = vsel %vm194, %v299, 0
        %303 = vmatpush.bf16.msra.mxu0 0
        %304 = vmatpush.bf16.msra.mxu0 0
        %305 = vmatpush.bf16.msra.mxu0 0
        %306 = vmatpush.bf16.msra.mxu0 0
        %307 = vmatpush.bf16.msra.mxu0 0
        %308 = vmatpush.bf16.msra.mxu0 0
        %309 = vmatpush.bf16.msra.mxu0 %v191
        %310 = vmatpush.bf16.msra.mxu0 %v190
        %311 = vmatmul.bf16.gmra.mxu0 %v301
        %v312 = vpop.f32.mrf.mxu0
        %v313 = vadd.f32 0.0, %v312
        %v314 = vpop.f32.mrf.mxu0
        %v315 = vadd.f32 0.0, %v314
        %316 = vdwg.mxu0
        %317 = vst [vmem:[#allocation2] sm:$0xff] %v313
        %318 = vst [vmem:[#allocation2 + $0x8] sm:$0xff] %v315
        %v319 = vld [vmem:[#allocation2] sm:$0xf]
        %v320 = vld [vmem:[#allocation2 + $0x1] sm:$0xf]
        %v321 = vld [vmem:[#allocation2 + $0x5] sm:$0xf]
        %v322 = vmax.f32 %v319, %v320
        %v323 = vmax.f32 %v322, %v321
        %s324 = scalar_lea.vmem %s168, 32
        %v325 = vld [vmem:[%s324] sm:$0xf]
        %v326 = vld [vmem:[%s324 + $0x4] sm:$0xf]
        %v329 = vunpack.c.l.b16 %v325
        %v330 = vunpack.c.l.b16 %v326
        %v331 = vpack.c.b16 %v330, %v329
        %v333 = vsel %vm194, %v331, 0
        %335 = vmatpush.bf16.msra.mxu0 0
        %336 = vmatpush.bf16.msra.mxu0 0
        %337 = vmatpush.bf16.msra.mxu0 0
        %338 = vmatpush.bf16.msra.mxu0 0
        %339 = vmatpush.bf16.msra.mxu0 0
        %340 = vmatpush.bf16.msra.mxu0 0
        %341 = vmatpush.bf16.msra.mxu0 %v191
        %342 = vmatpush.bf16.msra.mxu0 %v190
        %343 = vmatmul.bf16.gmra.mxu0 %v333
        %v344 = vpop.f32.mrf.mxu0
        %v345 = vadd.f32 0.0, %v344
        %v346 = vpop.f32.mrf.mxu0
        %v347 = vadd.f32 0.0, %v346
        %348 = vdwg.mxu0
        %349 = vst [vmem:[#allocation2] sm:$0xff] %v345
        %350 = vst [vmem:[#allocation2 + $0x8] sm:$0xff] %v347
        %v351 = vld [vmem:[#allocation2] sm:$0xf]
        %v352 = vld [vmem:[#allocation2 + $0x1] sm:$0xf]
        %v353 = vld [vmem:[#allocation2 + $0x5] sm:$0xf]
        %v354 = vmax.f32 %v351, %v352
        %v355 = vmax.f32 %v354, %v353
        %v356 = vmax.f32 %v282, %v323
        %v357 = vmax.f32 %v356, %v355
        %v358 = vadd.f32 %v357, %v286
        %v359 = vmax.f32 %v358, 0.0
        %s360 = scalar_lea.vmem %s163, 4 [#allocation3]
        %361 = vst.msk [vmem:[%s360] sm:$0xf] %vm290, %v359
        %s362 = scalar_lea.vmem %s168, 40
        %v363 = vld [vmem:[%s362] sm:$0xf]
        %v364 = vld [vmem:[%s362 + $0x4] sm:$0xf]
        %v367 = vunpack.c.l.b16 %v363
        %v368 = vunpack.c.l.b16 %v364
        %v369 = vpack.c.b16 %v368, %v367
        %v371 = vsel %vm194, %v369, 0
        %373 = vmatpush.bf16.msra.mxu0 0
        %374 = vmatpush.bf16.msra.mxu0 0
        %375 = vmatpush.bf16.msra.mxu0 0
        %376 = vmatpush.bf16.msra.mxu0 0
        %377 = vmatpush.bf16.msra.mxu0 0
        %378 = vmatpush.bf16.msra.mxu0 0
        %379 = vmatpush.bf16.msra.mxu0 %v191
        %380 = vmatpush.bf16.msra.mxu0 %v190
        %381 = vmatmul.bf16.gmra.mxu0 %v371
        %v382 = vpop.f32.mrf.mxu0
        %v383 = vadd.f32 0.0, %v382
        %v384 = vpop.f32.mrf.mxu0
        %v385 = vadd.f32 0.0, %v384
        %386 = vdwg.mxu0
        %387 = vst [vmem:[#allocation2] sm:$0xff] %v383
        %388 = vst [vmem:[#allocation2 + $0x8] sm:$0xff] %v385
        %v389 = vld [vmem:[#allocation2] sm:$0xf]
        %v390 = vld [vmem:[#allocation2 + $0x1] sm:$0xf]
        %v391 = vld [vmem:[#allocation2 + $0x5] sm:$0xf]
        %v392 = vmax.f32 %v389, %v390
        %v393 = vmax.f32 %v392, %v391
        %s394 = scalar_lea.vmem %s168, 48
        %v395 = vld [vmem:[%s394] sm:$0xf]
        %v396 = vld [vmem:[%s394 + $0x4] sm:$0xf]
        %v399 = vunpack.c.l.b16 %v395
        %v400 = vunpack.c.l.b16 %v396
        %v401 = vpack.c.b16 %v400, %v399
        %v403 = vsel %vm194, %v401, 0
        %405 = vmatpush.bf16.msra.mxu0 0
        %406 = vmatpush.bf16.msra.mxu0 0
        %407 = vmatpush.bf16.msra.mxu0 0
        %408 = vmatpush.bf16.msra.mxu0 0
        %409 = vmatpush.bf16.msra.mxu0 0
        %410 = vmatpush.bf16.msra.mxu0 0
        %411 = vmatpush.bf16.msra.mxu0 %v191
        %412 = vmatpush.bf16.msra.mxu0 %v190
        %413 = vmatmul.bf16.gmra.mxu0 %v403
        %v414 = vpop.f32.mrf.mxu0
        %v415 = vadd.f32 0.0, %v414
        %v416 = vpop.f32.mrf.mxu0
        %v417 = vadd.f32 0.0, %v416
        %418 = vdwg.mxu0
        %419 = vst [vmem:[#allocation2] sm:$0xff] %v415
        %420 = vst [vmem:[#allocation2 + $0x8] sm:$0xff] %v417
        %v421 = vld [vmem:[#allocation2] sm:$0xf]
        %v422 = vld [vmem:[#allocation2 + $0x1] sm:$0xf]
        %v423 = vld [vmem:[#allocation2 + $0x5] sm:$0xf]
        %v424 = vmax.f32 %v421, %v422
        %v425 = vmax.f32 %v424, %v423
        %v426 = vmax.f32 %v355, %v393
        %v427 = vmax.f32 %v426, %v425
        %v428 = vadd.f32 %v427, %v286
        %v429 = vmax.f32 %v428, 0.0
        %s430 = scalar_lea.vmem %s163, 8 [#allocation3]
        %431 = vst.msk [vmem:[%s430] sm:$0xf] %vm290, %v429
        %s432 = scalar_lea.vmem %s168, 56
        %v433 = vld [vmem:[%s432] sm:$0xf]
        %v434 = vld [vmem:[%s432 + $0x4] sm:$0xf]
        %v437 = vunpack.c.l.b16 %v433
        %v438 = vunpack.c.l.b16 %v434
        %v439 = vpack.c.b16 %v438, %v437
        %v441 = vsel %vm194, %v439, 0
        %443 = vmatpush.bf16.msra.mxu0 0
        %444 = vmatpush.bf16.msra.mxu0 0
        %445 = vmatpush.bf16.msra.mxu0 0
        %446 = vmatpush.bf16.msra.mxu0 0
        %447 = vmatpush.bf16.msra.mxu0 0
        %448 = vmatpush.bf16.msra.mxu0 0
        %449 = vmatpush.bf16.msra.mxu0 %v191
        %450 = vmatpush.bf16.msra.mxu0 %v190
        %451 = vmatmul.bf16.gmra.mxu0 %v441
        %v452 = vpop.f32.mrf.mxu0
        %v453 = vadd.f32 0.0, %v452
        %v454 = vpop.f32.mrf.mxu0
        %v455 = vadd.f32 0.0, %v454
        %456 = vdwg.mxu0
        %457 = vst [vmem:[#allocation2] sm:$0xff] %v453
        %458 = vst [vmem:[#allocation2 + $0x8] sm:$0xff] %v455
        %v459 = vld [vmem:[#allocation2] sm:$0xf]
        %v460 = vld [vmem:[#allocation2 + $0x1] sm:$0xf]
        %v461 = vld [vmem:[#allocation2 + $0x5] sm:$0xf]
        %v462 = vmax.f32 %v459, %v460
        %v463 = vmax.f32 %v462, %v461
        %s464 = scalar_lea.vmem %s168, 64
        %v465 = vld [vmem:[%s464] sm:$0xf]
        %v466 = vld [vmem:[%s464 + $0x4] sm:$0xf]
        %v469 = vunpack.c.l.b16 %v465
        %v470 = vunpack.c.l.b16 %v466
        %v471 = vpack.c.b16 %v470, %v469
        %v473 = vsel %vm194, %v471, 0
        %475 = vmatpush.bf16.msra.mxu0 0
        %476 = vmatpush.bf16.msra.mxu0 0
        %477 = vmatpush.bf16.msra.mxu0 0
        %478 = vmatpush.bf16.msra.mxu0 0
        %479 = vmatpush.bf16.msra.mxu0 0
        %480 = vmatpush.bf16.msra.mxu0 0
        %481 = vmatpush.bf16.msra.mxu0 %v191
        %482 = vmatpush.bf16.msra.mxu0 %v190
        %483 = vmatmul.bf16.gmra.mxu0 %v473
        %v484 = vpop.f32.mrf.mxu0
        %v485 = vadd.f32 0.0, %v484
        %v486 = vpop.f32.mrf.mxu0
        %v487 = vadd.f32 0.0, %v486
        %488 = vdwg.mxu0
        %489 = vst [vmem:[#allocation2] sm:$0xff] %v485
        %490 = vst [vmem:[#allocation2 + $0x8] sm:$0xff] %v487
        %v491 = vld [vmem:[#allocation2] sm:$0xf]
        %v492 = vld [vmem:[#allocation2 + $0x1] sm:$0xf]
        %v493 = vld [vmem:[#allocation2 + $0x5] sm:$0xf]
        %v494 = vmax.f32 %v491, %v492
        %v495 = vmax.f32 %v494, %v493
        %v496 = vmax.f32 %v425, %v463
        %v497 = vmax.f32 %v496, %v495
        %v498 = vadd.f32 %v497, %v286
        %v499 = vmax.f32 %v498, 0.0
        %s500 = scalar_lea.vmem %s163, 12 [#allocation3]
        %501 = vst.msk [vmem:[%s500] sm:$0xf] %vm290, %v499
        %s502 = sand.u32 %s93, 1
        %s503 = scalar_lea.sflag [#allocation4], %s502
        %s504 = sand.u32 %s93, 1
        %s505 = smul.addr %s504, 16
        %s506 = scalar_lea.vmem [#allocation3], %s505
        // Predicated region
        $region33: #{basic_stem_forward.1} parent=31 // pred_check
          %p507 = pneg %p103
        $region34: #{basic_stem_forward.1} parent=31 // pred_check_branch
          %509 = sbr.rel (%p507) target = $region36
        $region35: #{basic_stem_forward.1} parent=31 // pred_region
          %511 = vsyncadd %s503, 0
          %s512 = smul.addr %s17, 4
          %s513 = smul.addr %s512, 4
          %s514 = scalar_lea.hbm %s3, %s513
          %s515 = sshll.u32 %s506, 4
          %s516 = int_to_ptr.vmem [resolvable:$true] %s515
          %s517 = sshll.u32 %s514, 4
          %s518 = int_to_ptr.hbm [resolvable:$true] %s517
          %523 = dma.vmem_to_hbm [thread:$0]  %s516, 256, %s518, %s503, 64, 64, 4
        $region36: #{basic_stem_forward.1} parent=31 // pred_fallthru
          _
      $region32: #{basic_stem_forward.1} parent=5 // pred_fallthru
        _
      %p524 = scmp.le.s32.totalorder 2, %s12
      // Predicated region
      $region37: #{basic_stem_forward.1} parent=5 // pred_check
        %p525 = pneg %p524
      $region38: #{basic_stem_forward.1} parent=5 // pred_check_branch
        %527 = sbr.rel (%p525) target = $region40
      $region39: #{basic_stem_forward.1} parent=5 // pred_region
        %s528 = ssub.s32 %s12, 2
        // Predicated region
        $region41: #{basic_stem_forward.1} parent=39 // pred_check
          %p529 = pneg %p109
        $region42: #{basic_stem_forward.1} parent=39 // pred_check_branch
          %531 = sbr.rel (%p529) target = $region44
        $region43: #{basic_stem_forward.1} parent=39 // pred_region
          %s532 = sand.u32 %s94, 1
          %s533 = scalar_lea.sflag [#allocation4], %s532
          %s534 = sand.u32 %s94, 1
          %s535 = smul.addr %s534, 16
          %s536 = scalar_lea.vmem [#allocation3], %s535
          %538 = dma.done %s533, 256
        $region44: #{basic_stem_forward.1} parent=39 // pred_fallthru
          _
      $region40: #{basic_stem_forward.1} parent=5 // pred_fallthru
        _
    $region6: #{basic_stem_forward.1} parent=1 // loop_footer
      %s16 = sadd.s32 1, %s12
    $region7: #{basic_stem_forward.1} parent=1 // loop_footer_branch
      %11 = sbr.rel target = $region3
    $region8: #{basic_stem_forward.1} parent=1 // loop_exit
      _
    %539 = vsyncpa [#allocation4], 1
    %s540 = scalar_lea.sflag [#allocation4], 1
    %541 = vsyncpa %s540, 1

</llo_original>
